<compile_context>
chip_gen: v5e
topology: v5e:2x2
jax: 0.10.0
libtpu: 0.0.40
codegen_flags: <defaults>
</compile_context>

<pallas_src>
import functools

import jax
import jax.numpy as jnp
from jax import lax
from jax.experimental import pallas as pl
from jax.experimental.pallas import tpu as pltpu


def _round_up(x, m):
    return ((x + m - 1) // m) * m


def _loss_kernel(logits_ref, qtrue_ref, resid_ref, target_ref, centers_ref,
                 out_ref, *, batch, block_b):
    # ---- tiny (TB, K) tensors: always f32 ----
    logits = logits_ref[...].astype(jnp.float32)        # (TB, K)
    q = qtrue_ref[...].astype(jnp.float32)              # (TB, K)

    tb = logits.shape[0]
    row = pl.program_id(0) * block_b + lax.broadcasted_iota(jnp.int32, (tb, 1), 0)
    valid = row < batch                                  # (TB, 1) partial-tile mask

    # log_softmax / softmax over clusters (dim=1), f32
    m = jnp.max(logits, axis=1, keepdims=True)
    z = logits - m
    lse = jnp.log(jnp.sum(jnp.exp(z), axis=1, keepdims=True))
    logp = z - lse                                       # (TB, K)
    p = jnp.exp(logp)                                    # (TB, K)

    # KLDivLoss pointwise term; zero where the target is exactly 0 (PyTorch xlogy).
    q_safe = jnp.where(q > 0, q, 1.0)
    kl = jnp.where(q > 0, q * (jnp.log(q_safe) - logp), 0.0)
    kl = jnp.where(valid, kl, 0.0)

    # ---- dominant (TB, K, D) stream: keep the broadcast add/sub in the storage
    # dtype (bf16 when the wrapper casts); upcast only at the squared difference
    # so the D-reduction accumulates in f32.  No f32 copy of the whole block.
    diff = target_ref[...][:, None, :] - (centers_ref[...][None, :, :] + resid_ref[...])
    diff32 = diff.astype(jnp.float32)                    # (TB, K, D)
    per_cluster = jnp.mean(diff32 * diff32, axis=-1)     # (TB, K)  my_loss == MSE over D
    weighted = jnp.where(valid, p * per_cluster, 0.0)

    # ---- lane-dense output: two scalars per tile in one unmasked (8,128) store.
    kl_sum = jnp.sum(kl)
    w_sum = jnp.sum(weighted)
    row8 = lax.broadcasted_iota(jnp.int32, (8, 128), 0)
    out_ref[...] = jnp.where(row8 == 0, kl_sum, jnp.where(row8 == 1, w_sum, 0.0))


def _vmem_capacity_bytes():
    try:
        return int(pltpu.get_tpu_info().vmem_capacity_bytes)
    except Exception:
        return 64 << 20          # conservative fallback: v7x per-TensorCore VMEM


def _per_row_vmem_bytes(k, d, big_itemsize):
    """VMEM bytes per batch row (double-buffered inputs + in-body temporaries),
    accounting for lane/sublane padding of the tiled blocks."""
    kd_pad = _round_up(k, 8) * _round_up(d, 128)         # (K, D) slab of the 3-D block
    k_lane = _round_up(k, 128)                           # (TB, K) blocks pad K to 128 lanes
    d_lane = _round_up(d, 128)
    ins = 2 * (big_itemsize * (kd_pad + d_lane) + 4 * 2 * k_lane)   # double-buffered inputs
    tmps = 2 * big_itemsize * kd_pad + 2 * 4 * kd_pad               # y/diff + f32 diff/square
    return ins + tmps


def _fixed_vmem_bytes(k, d, big_itemsize):
    kd_pad = _round_up(k, 8) * _round_up(d, 128)
    return 2 * big_itemsize * kd_pad + 2 * 8 * 128 * 4   # resident centers + (8,128) output


def _choose_block_b(batch, k, d, big_itemsize, vmem_budget_bytes):
    """Largest batch tile fitting the budget; multiple of 16; >=2 grid steps when
    the batch is big enough (v7x megacore sharding + DMA/compute overlap)."""
    per_row = _per_row_vmem_bytes(k, d, big_itemsize)
    tb = int(vmem_budget_bytes) // max(per_row, 1)
    tb16 = (tb // 16) * 16
    if batch > 32:
        half = _round_up(-(-batch // 2), 16)
        if half <= tb16:
            return min(half, batch)
    if tb >= batch:
        return batch              # block == full dim is always a legal layout
    return max(16, tb16)


def relaxed_probabilistic_multires_loss(ypred0, ypred1, ytrue0, ytrue1,
                                        cluster_centers, alpha, *,
                                        block_b=None,
                                        cast_dominant_to_bf16=True):
    """Returns the scalar loss (float32)."""
    B, K = ypred0.shape
    D = ypred1.shape[-1]

    # Tiny (B,K) tensors stay f32; the dominant stream is bf16 by default
    # (HBM-bound op -> halving its bytes is the single biggest lever).
    ypred0 = ypred0.astype(jnp.float32)
    ytrue0 = ytrue0.astype(jnp.float32)
    if cast_dominant_to_bf16 and ypred1.dtype == jnp.float32:
        ypred1 = ypred1.astype(jnp.bfloat16)
    big_dtype = ypred1.dtype
    ytrue1 = ytrue1.astype(big_dtype)
    cluster_centers = cluster_centers.astype(big_dtype)
    big_itemsize = jnp.dtype(big_dtype).itemsize

    vmem_capacity = _vmem_capacity_bytes()
    if block_b is None:
        # ~45% of per-core VMEM: ~57 MiB on v5e/v6e (128 MiB), ~28 MiB on v7x (64 MiB).
        block_b = _choose_block_b(B, K, D, big_itemsize, int(vmem_capacity * 0.45))
    grid_n = pl.cdiv(B, block_b)

    vmem_need = (block_b * _per_row_vmem_bytes(K, D, big_itemsize)
                 + _fixed_vmem_bytes(K, D, big_itemsize))
    vmem_limit = int(min(max(vmem_need + (4 << 20), 32 << 20),
                         max(vmem_capacity - (8 << 20), 32 << 20)))

    kernel = functools.partial(_loss_kernel, batch=B, block_b=block_b)

    out = pl.pallas_call(
        kernel,
        grid=(grid_n,),
        in_specs=[
            pl.BlockSpec((block_b, K), lambda i: (i, 0)),        # ypred0 (logits, f32)
            pl.BlockSpec((block_b, K), lambda i: (i, 0)),        # ytrue0 (target dist, f32)
            pl.BlockSpec((block_b, K, D), lambda i: (i, 0, 0)),  # ypred1 (residuals)
            pl.BlockSpec((block_b, D), lambda i: (i, 0)),        # ytrue1 (regression target)
            pl.BlockSpec((K, D), lambda i: (0, 0)),              # cluster centers: resident
        ],
        out_specs=pl.BlockSpec((8, 128), lambda i: (i, 0)),      # lane-dense per-tile partials
        out_shape=jax.ShapeDtypeStruct((grid_n * 8, 128), jnp.float32),
        compiler_params=pltpu.CompilerParams(
            dimension_semantics=("parallel",),   # batch tiles independent (megacore)
            vmem_limit_bytes=vmem_limit,
        ),
    )(ypred0, ytrue0, ypred1, ytrue1, cluster_centers)

    # Tiny final reduction in plain JAX (exact global means, robust to ragged B).
    parts = out.reshape(grid_n, 8, 128)
    kl_total = jnp.sum(parts[:, 0, 0])
    w_total = jnp.sum(parts[:, 1, 0])
    l1 = kl_total / (B * K)          # KLDivLoss(reduction='mean') == sum / numel
    l2 = w_total / B                 # mean over batch of per-row sum over clusters
    return (l1 + jnp.float32(alpha) * l2).astype(jnp.float32)


def _reference(ypred0, ypred1, ytrue0, ytrue1, centers, alpha):
    logp = jax.nn.log_softmax(ypred0, axis=1)
    p = jax.nn.softmax(ypred0, axis=1)
    q = ytrue0
    kl = jnp.where(q > 0, q * (jnp.log(jnp.where(q > 0, q, 1.0)) - logp), 0.0)
    l1 = jnp.mean(kl)
    y = centers[None, :, :] + ypred1
    per_cluster = jnp.mean((ytrue1[:, None, :] - y) ** 2, axis=-1)
    l2 = jnp.mean(jnp.sum(p * per_cluster, axis=1))
    return l1 + alpha * l2


def _make_inputs(batch, k, d, seed=0):
    key = jax.random.PRNGKey(seed)
    k0, k1, k2, k3, k4 = jax.random.split(key, 5)
    ypred0 = jax.random.normal(k0, (batch, k), dtype=jnp.float32)
    ypred1 = 0.1 * jax.random.normal(k1, (batch, k, d), dtype=jnp.float32)
    ytrue0 = jax.nn.softmax(jax.random.normal(k2, (batch, k), dtype=jnp.float32), axis=1)
    # Exact zeros in the target distribution exercise the KL zero-target guard.
    ytrue0 = ytrue0.at[:, 0].set(0.0)
    ytrue0 = ytrue0 / jnp.sum(ytrue0, axis=1, keepdims=True)
    ytrue1 = jax.random.normal(k3, (batch, d), dtype=jnp.float32)
    # Deterministic "kmeans" cluster centers (stands in for the pickle file).
    centers = jax.random.normal(k4, (k, d), dtype=jnp.float32)
    return ypred0, ypred1, ytrue0, ytrue1, centers


if __name__ == "__main__":
    alpha = 0.5
    K, D = 8, 128

    # --- Test 1: f32 dominant stream, single-tile path ---
    B = 16
    ypred0, ypred1, ytrue0, ytrue1, centers = _make_inputs(B, K, D, seed=0)
    loss = relaxed_probabilistic_multires_loss(
        ypred0, ypred1, ytrue0, ytrue1, centers, alpha,
        cast_dominant_to_bf16=False)
    loss = jax.block_until_ready(loss)
    ref = _reference(ypred0, ypred1, ytrue0, ytrue1, centers, alpha)
    assert jnp.allclose(loss, ref, rtol=1e-5, atol=1e-5), (loss, ref)

    # --- Test 2: f32, explicit small block_b with a partial last tile (masking) ---
    B2 = 20
    ypred0, ypred1, ytrue0, ytrue1, centers = _make_inputs(B2, K, D, seed=1)
    loss2 = relaxed_probabilistic_multires_loss(
        ypred0, ypred1, ytrue0, ytrue1, centers, alpha,
        block_b=8, cast_dominant_to_bf16=False)
    loss2 = jax.block_until_ready(loss2)
    ref2 = _reference(ypred0, ypred1, ytrue0, ytrue1, centers, alpha)
    assert jnp.allclose(loss2, ref2, rtol=1e-5, atol=1e-5), (loss2, ref2)

    # --- Test 3: default bf16 dominant stream, auto block_b (>=2 grid steps) ---
    B3 = 40
    ypred0, ypred1, ytrue0, ytrue1, centers = _make_inputs(B3, K, D, seed=2)
    loss3 = relaxed_probabilistic_multires_loss(
        ypred0, ypred1, ytrue0, ytrue1, centers, alpha)
    loss3 = jax.block_until_ready(loss3)
    # Reference on the same bf16-rounded storage of the dominant stream.
    yp1b = ypred1.astype(jnp.bfloat16).astype(jnp.float32)
    yt1b = ytrue1.astype(jnp.bfloat16).astype(jnp.float32)
    cb = centers.astype(jnp.bfloat16).astype(jnp.float32)
    ref3 = _reference(ypred0, yp1b, ytrue0, yt1b, cb, alpha)
    assert jnp.allclose(loss3, ref3, rtol=1e-2, atol=1e-2), (loss3, ref3)

    print("KERNEL_OK")
</pallas_src>

<mosaic_0001>
module attributes {stable_mosaic.version = 11 : i64} {
  func.func @_loss_kernel(%arg0: i32, %arg1: memref<16x8xf32, #tpu.memory_space<vmem>>, %arg2: memref<16x8xf32, #tpu.memory_space<vmem>>, %arg3: memref<16x8x128xf32, #tpu.memory_space<vmem>>, %arg4: memref<16x128xf32, #tpu.memory_space<vmem>>, %arg5: memref<8x128xf32, #tpu.memory_space<vmem>>, %arg6: memref<8x128xf32, #tpu.memory_space<vmem>>) attributes {dimension_semantics = [#tpu.dimension_semantics<parallel>], iteration_bounds = array<i64: 1>, scalar_prefetch = 0 : i64, scratch_operands = 0 : i64, tpu.core_type = #tpu.core_type<tc>, window_params = [{transform_indices = @transform_0, window_bounds = array<i64: 16, 8>}, {transform_indices = @transform_1, window_bounds = array<i64: 16, 8>}, {transform_indices = @transform_2, window_bounds = array<i64: 16, 8, 128>}, {transform_indices = @transform_3, window_bounds = array<i64: 16, 128>}, {pipeline_mode = #tpu.pipeline_mode<synchronous>, transform_indices = @transform_4, window_bounds = array<i64: 8, 128>}, {transform_indices = @transform_5, window_bounds = array<i64: 8, 128>}]} {
    %c0 = arith.constant 0 : index
    %c0_0 = arith.constant 0 : index
    %0 = vector.load %arg1[%c0, %c0_0] : memref<16x8xf32, #tpu.memory_space<vmem>>, vector<16x8xf32>
    %c0_1 = arith.constant 0 : index
    %c0_2 = arith.constant 0 : index
    %1 = vector.load %arg2[%c0_1, %c0_2] : memref<16x8xf32, #tpu.memory_space<vmem>>, vector<16x8xf32>
    %c16_i32 = arith.constant 16 : i32
    %2 = arith.muli %arg0, %c16_i32 : i32
    %3 = tpu.iota {dimensions = array<i32: 0>} : vector<16x1xi32>
    %4 = vector.broadcast %2 : i32 to vector<16x1xi32>
    %5 = arith.addi %4, %3 : vector<16x1xi32>
    %c16_i32_3 = arith.constant 16 : i32
    %6 = vector.broadcast %c16_i32_3 : i32 to vector<16x1xi32>
    %7 = arith.cmpi slt, %5, %6 : vector<16x1xi32>
    %cst = arith.constant dense<0xFF800000> : vector<16xf32>
    %8 = vector.multi_reduction <maximumf>, %0, %cst [1] : vector<16x8xf32> to vector<16xf32>
    %9 = vector.shape_cast %8 : vector<16xf32> to vector<16x1xf32>
    %10 = vector.broadcast %9 : vector<16x1xf32> to vector<16x8xf32>
    %11 = arith.subf %0, %10 : vector<16x8xf32>
    %12 = math.exp %11 : vector<16x8xf32>
    %cst_4 = arith.constant dense<0.000000e+00> : vector<16xf32>
    %13 = vector.multi_reduction <add>, %12, %cst_4 [1] : vector<16x8xf32> to vector<16xf32>
    %14 = vector.shape_cast %13 : vector<16xf32> to vector<16x1xf32>
    %15 = math.log %14 : vector<16x1xf32>
    %16 = vector.broadcast %15 : vector<16x1xf32> to vector<16x8xf32>
    %17 = arith.subf %11, %16 : vector<16x8xf32>
    %18 = math.exp %17 : vector<16x8xf32>
    %cst_5 = arith.constant 0.000000e+00 : f32
    %19 = vector.broadcast %cst_5 : f32 to vector<16x8xf32>
    %20 = arith.cmpf ogt, %1, %19 : vector<16x8xf32>
    %cst_6 = arith.constant 1.000000e+00 : f32
    %21 = vector.broadcast %cst_6 : f32 to vector<16x8xf32>
    %22 = arith.select %20, %1, %21 : vector<16x8xi1>, vector<16x8xf32>
    %cst_7 = arith.constant 0.000000e+00 : f32
    %23 = vector.broadcast %cst_7 : f32 to vector<16x8xf32>
    %24 = arith.cmpf ogt, %1, %23 : vector<16x8xf32>
    %25 = math.log %22 : vector<16x8xf32>
    %26 = arith.subf %25, %17 : vector<16x8xf32>
    %27 = arith.mulf %1, %26 : vector<16x8xf32>
    %cst_8 = arith.constant 0.000000e+00 : f32
    %28 = vector.broadcast %cst_8 : f32 to vector<16x8xf32>
    %29 = arith.select %24, %27, %28 : vector<16x8xi1>, vector<16x8xf32>
    %cst_9 = arith.constant 0.000000e+00 : f32
    %30 = vector.shape_cast %7 : vector<16x1xi1> to vector<16x1xi1>
    %31 = vector.broadcast %30 : vector<16x1xi1> to vector<16x8xi1>
    %32 = vector.broadcast %cst_9 : f32 to vector<16x8xf32>
    %33 = arith.select %31, %29, %32 : vector<16x8xi1>, vector<16x8xf32>
    %c0_10 = arith.constant 0 : index
    %c0_11 = arith.constant 0 : index
    %34 = vector.load %arg4[%c0_10, %c0_11] : memref<16x128xf32, #tpu.memory_space<vmem>>, vector<16x128xf32>
    %35 = vector.shape_cast %34 : vector<16x128xf32> to vector<16x1x128xf32>
    %c0_12 = arith.constant 0 : index
    %c0_13 = arith.constant 0 : index
    %36 = vector.load %arg5[%c0_12, %c0_13] : memref<8x128xf32, #tpu.memory_space<vmem>>, vector<8x128xf32>
    %37 = vector.shape_cast %36 : vector<8x128xf32> to vector<1x8x128xf32>
    %c0_14 = arith.constant 0 : index
    %c0_15 = arith.constant 0 : index
    %c0_16 = arith.constant 0 : index
    %38 = vector.load %arg3[%c0_14, %c0_15, %c0_16] : memref<16x8x128xf32, #tpu.memory_space<vmem>>, vector<16x8x128xf32>
    %39 = vector.broadcast %37 : vector<1x8x128xf32> to vector<16x8x128xf32>
    %40 = arith.addf %39, %38 : vector<16x8x128xf32>
    %41 = vector.broadcast %35 : vector<16x1x128xf32> to vector<16x8x128xf32>
    %42 = arith.subf %41, %40 : vector<16x8x128xf32>
    %43 = arith.mulf %42, %42 : vector<16x8x128xf32>
    %cst_17 = arith.constant dense<0.000000e+00> : vector<16x8xf32>
    %44 = vector.multi_reduction <add>, %43, %cst_17 [2] : vector<16x8x128xf32> to vector<16x8xf32>
    %cst_18 = arith.constant 1.280000e+02 : f32
    %45 = vector.broadcast %cst_18 : f32 to vector<16x8xf32>
    %46 = arith.divf %44, %45 : vector<16x8xf32>
    %47 = arith.mulf %18, %46 : vector<16x8xf32>
    %cst_19 = arith.constant 0.000000e+00 : f32
    %48 = vector.shape_cast %7 : vector<16x1xi1> to vector<16x1xi1>
    %49 = vector.broadcast %48 : vector<16x1xi1> to vector<16x8xi1>
    %50 = vector.broadcast %cst_19 : f32 to vector<16x8xf32>
    %51 = arith.select %49, %47, %50 : vector<16x8xi1>, vector<16x8xf32>
    %52 = vector.shape_cast %33 : vector<16x8xf32> to vector<1x16x8xf32>
    %cst_20 = arith.constant dense<0.000000e+00> : vector<1xf32>
    %53 = vector.multi_reduction <add>, %52, %cst_20 [1, 2] : vector<1x16x8xf32> to vector<1xf32>
    %54 = vector.shape_cast %53 : vector<1xf32> to vector<1x1x1xf32>
    %55 = vector.extract %54[0, 0, 0] : f32 from vector<1x1x1xf32>
    %56 = vector.shape_cast %51 : vector<16x8xf32> to vector<1x16x8xf32>
    %cst_21 = arith.constant dense<0.000000e+00> : vector<1xf32>
    %57 = vector.multi_reduction <add>, %56, %cst_21 [1, 2] : vector<1x16x8xf32> to vector<1xf32>
    %58 = vector.shape_cast %57 : vector<1xf32> to vector<1x1x1xf32>
    %59 = vector.extract %58[0, 0, 0] : f32 from vector<1x1x1xf32>
    %60 = tpu.iota {dimensions = array<i32: 0>} : vector<8x128xi32>
    %c0_i32 = arith.constant 0 : i32
    %61 = vector.broadcast %c0_i32 : i32 to vector<8x128xi32>
    %62 = arith.cmpi eq, %60, %61 : vector<8x128xi32>
    %c1_i32 = arith.constant 1 : i32
    %63 = vector.broadcast %c1_i32 : i32 to vector<8x128xi32>
    %64 = arith.cmpi eq, %60, %63 : vector<8x128xi32>
    %cst_22 = arith.constant 0.000000e+00 : f32
    %65 = vector.broadcast %59 : f32 to vector<8x128xf32>
    %66 = vector.broadcast %cst_22 : f32 to vector<8x128xf32>
    %67 = arith.select %64, %65, %66 : vector<8x128xi1>, vector<8x128xf32>
    %68 = vector.broadcast %55 : f32 to vector<8x128xf32>
    %69 = arith.select %62, %68, %67 : vector<8x128xi1>, vector<8x128xf32>
    %c0_23 = arith.constant 0 : index
    %c0_24 = arith.constant 0 : index
    %70 = vector.load %arg6[%c0_23, %c0_24] : memref<8x128xf32, #tpu.memory_space<vmem>>, vector<8x128xf32>
    tpu.vector_store %arg6[%c0_23, %c0_24], %69 {strides = array<i32>} : memref<8x128xf32, #tpu.memory_space<vmem>>, vector<8x128xf32>,
    return
  }
  func.func @transform_0(%arg0: i32) -> (i32, i32) {
    %c0_i32 = arith.constant 0 : i32
    %c0_i32_0 = arith.constant 0 : i32
    return %arg0, %c0_i32 : i32, i32
  }
  func.func @transform_1(%arg0: i32) -> (i32, i32) {
    %c0_i32 = arith.constant 0 : i32
    %c0_i32_0 = arith.constant 0 : i32
    return %arg0, %c0_i32 : i32, i32
  }
  func.func @transform_2(%arg0: i32) -> (i32, i32, i32) {
    %c0_i32 = arith.constant 0 : i32
    %c0_i32_0 = arith.constant 0 : i32
    %c0_i32_1 = arith.constant 0 : i32
    return %arg0, %c0_i32, %c0_i32_0 : i32, i32, i32
  }
  func.func @transform_3(%arg0: i32) -> (i32, i32) {
    %c0_i32 = arith.constant 0 : i32
    %c0_i32_0 = arith.constant 0 : i32
    return %arg0, %c0_i32 : i32, i32
  }
  func.func @transform_4(%arg0: i32) -> (i32, i32) {
    %c0_i32 = arith.constant 0 : i32
    %c0_i32_0 = arith.constant 0 : i32
    %c0_i32_1 = arith.constant 0 : i32
    return %c0_i32, %c0_i32_0 : i32, i32
  }
  func.func @transform_5(%arg0: i32) -> (i32, i32) {
    %c0_i32 = arith.constant 0 : i32
    %c0_i32_0 = arith.constant 0 : i32
    return %arg0, %c0_i32 : i32, i32
  }
}

</mosaic_0001>

<llo_original>
// kernel: tpu_custom_call.1
$region0: #{tpu_custom_call.1}
  #allocation0 [shape = 'u32[]', space=smem, size = 0x4, offset = 0x4, fixed_abs, tag = 'smem constant byte address 0x4 - core index']
  #allocation1 [shape = 'u32[72,128]{1,0:T(1,128)}', space=vmem, size = 0x9000, scoped, tag = 'internal scratch']
  %s0 = inlined_call_operand.vmem [shape: f32[16,8], index: 0, kind: input, shape index: {}]
  %s1 = inlined_call_operand.vmem [shape: f32[16,8], index: 1, kind: input, shape index: {}]
  %s2 = inlined_call_operand.hbm [shape: f32[16,8,128], index: 2, kind: input, shape index: {}]
  %s3 = inlined_call_operand.vmem [shape: f32[16,128], index: 3, kind: input, shape index: {}]
  %s4 = inlined_call_operand.vmem [shape: f32[8,128], index: 4, kind: input, shape index: {}]
  %s5 = inlined_call_operand.hbm [shape: f32[8,128], index: 5, kind: output, shape index: {}]
  %s6 = sld [smem:[#allocation0]]
  $region34: #{tpu_custom_call.1} parent=0
    _
  %s8 = ssub.s32 1, %s6
  %s9 = scalar_select 0, %s8, %s6
  $region1: #{tpu_custom_call.1} parent=0
    #allocation2 [shape = 'u8[65536]{0}', space=vmem, size = 0x10000, scoped, tag = 'input window, operand 2, single buffered']
    #allocation3 [shape = 's32[1]{0}', space=sflag, size = 0x4, scoped, tag = 'scoped memory for tpu_custom_call.1']
    #allocation4 [shape = 's32[1]{0}', space=sflag, size = 0x4, scoped, tag = 'scoped memory for tpu_custom_call.1']
    #allocation5 [shape = 'u8[4096]{0}', space=vmem, size = 0x1000, scoped, tag = 'output window, operand 0, single buffered']
    %10 = vsyncpa [#allocation3], 0
    %11 = vsyncpa [#allocation4], 0
    // Predicated region
    $region2: #{tpu_custom_call.1} parent=1 // pred_check
      _
    $region3: #{tpu_custom_call.1} parent=1 // pred_check_branch
      %13 = sbr.rel (0) target = $region5
    $region4: #{tpu_custom_call.1} parent=1 // pred_region
      _
    $region5: #{tpu_custom_call.1} parent=1 // pred_fallthru
      _
    // Predicated region
    $region6: #{tpu_custom_call.1} parent=1 // pred_check
      _
    $region7: #{tpu_custom_call.1} parent=1 // pred_check_branch
      %15 = sbr.rel (0) target = $region9
    $region8: #{tpu_custom_call.1} parent=1 // pred_region
      _
    $region9: #{tpu_custom_call.1} parent=1 // pred_fallthru
      _
    // Predicated region
    $region10: #{tpu_custom_call.1} parent=1 // pred_check
      _
    $region11: #{tpu_custom_call.1} parent=1 // pred_check_branch
      %17 = sbr.rel (0) target = $region13
    $region12: #{tpu_custom_call.1} parent=1 // pred_region
      %19 = vsyncadd [#allocation3], 0
      %s20 = sshll.u32 %s2, 4
      %s21 = int_to_ptr.hbm [resolvable:$true] %s20
      %s22 = sshll.u32 [#allocation2], 4
      %s23 = int_to_ptr.vmem [resolvable:$true] %s22
      %28 = dma.hbm_to_vmem [thread:$0]  %s21, 2048, %s23, [#allocation3], 128, 128, 8
    $region13: #{tpu_custom_call.1} parent=1 // pred_fallthru
      _
    // Predicated region
    $region14: #{tpu_custom_call.1} parent=1 // pred_check
      _
    $region15: #{tpu_custom_call.1} parent=1 // pred_check_branch
      %30 = sbr.rel (0) target = $region17
    $region16: #{tpu_custom_call.1} parent=1 // pred_region
      _
    $region17: #{tpu_custom_call.1} parent=1 // pred_fallthru
      _
    // Predicated region
    $region18: #{tpu_custom_call.1} parent=1 // pred_check
      _
    $region19: #{tpu_custom_call.1} parent=1 // pred_check_branch
      %32 = sbr.rel (0) target = $region21
    $region20: #{tpu_custom_call.1} parent=1 // pred_region
      _
    $region21: #{tpu_custom_call.1} parent=1 // pred_fallthru
      _
    // Predicated region
    $region22: #{tpu_custom_call.1} parent=1 // pred_check
      _
    $region23: #{tpu_custom_call.1} parent=1 // pred_check_branch
      %34 = sbr.rel (0) target = $region25
    $region24: #{tpu_custom_call.1} parent=1 // pred_region
      %36 = dma.done [#allocation3], 2048
    $region25: #{tpu_custom_call.1} parent=1 // pred_fallthru
      _
    %v37 = vld [vmem:[%s0] sm:$0xff]
    %v38 = vld [vmem:[%s0 + $0x8] sm:$0xff]
    %v39 = vld [vmem:[%s1] sm:$0xff]
    %v40 = vld [vmem:[%s1 + $0x8] sm:$0xff]
    %s41 = smul.u32 0, 16
    %v42 = vlaneseq
    %v43 = vshrl.u32 %v42, 7
    %v44 = vadd.s32 %v43, 8
    %v45 = vstv %s41
    %v46 = vadd.s32 %v45, %v43
    %v47 = vadd.s32 %v45, %v44
    %vm48 = vcmp.lt.s32.totalorder %v46, 16
    %vm49 = vcmp.lt.s32.totalorder %v47, 16
    %vm50 = vcmask 64512
    %v51 = vsel %vm50, %v37, -inf
    %52 = vmax.xlane.f32.xlu0 %v51
    %v53 = vpop.xlane.xlu0 %52
    %v54 = vsel %vm50, %v38, -inf
    %55 = vmax.xlane.f32.xlu0 %v54
    %v56 = vpop.xlane.xlu0 %55
    %v57 = vsub.f32 %v37, %v53
    %v58 = vsub.f32 %v38, %v56
    %v59 = vmul.f32 %v57, 1.442695
    %v60 = vpow.pop %v59
    %v61 = vmul.f32 %v58, 1.442695
    %v62 = vpow.pop %v61
    %v63 = vsel %vm50, %v60, 0.0
    %64 = vadd.xlane.f32.xlu0 %v63
    %v65 = vpop.xlane.xlu0 %64
    %v66 = vsel %vm50, %v62, 0.0
    %67 = vadd.xlane.f32.xlu0 %v66
    %v68 = vpop.xlane.xlu0 %67
    %v69 = vlog2.pop %v65
    %v70 = vmul.f32 %v69, 0.6931472
    %v71 = vlog2.pop %v68
    %v72 = vmul.f32 %v71, 0.6931472
    %v73 = vsub.f32 %v57, %v70
    %v74 = vsub.f32 %v58, %v72
    %v75 = vmul.f32 %v73, 1.442695
    %v76 = vpow.pop %v75
    %v77 = vmul.f32 %v74, 1.442695
    %v78 = vpow.pop %v77
    %vm79 = vcmp.gt.f32.partialorder %v39, 0.0
    %vm80 = vcmp.gt.f32.partialorder %v40, 0.0
    %v81 = vsel %vm79, %v39, 1.0
    %v82 = vsel %vm80, %v40, 1.0
    %v83 = vlog2.pop %v81
    %v84 = vmul.f32 %v83, 0.6931472
    %v85 = vlog2.pop %v82
    %v86 = vmul.f32 %v85, 0.6931472
    %v87 = vsub.f32 %v84, %v73
    %v88 = vsub.f32 %v86, %v74
    %v89 = vmul.f32 %v39, %v87
    %v90 = vmul.f32 %v40, %v88
    %v91 = vsel %vm79, %v89, 0.0
    %v92 = vsel %vm80, %v90, 0.0
    %v93 = vsel %vm48, 1, 0
    %v94 = vsel %vm49, 1, 0
    %vm95 = vcmp.eq.s32.totalorder %v93, 1
    %vm96 = vcmp.eq.s32.totalorder %v94, 1
    %v97 = vsel %vm95, %v91, 0.0
    %v98 = vsel %vm96, %v92, 0.0
    %v99 = vld [vmem:[%s3] sm:$0xff]
    %v100 = vld [vmem:[%s3 + $0x8] sm:$0xff]
    %v103 = vrot.slane %v99, 1
    %v104 = vrot.slane %v99, 2
    %v105 = vrot.slane %v99, 3
    %v106 = vrot.slane %v99, 4
    %v107 = vrot.slane %v99, 5
    %v108 = vrot.slane %v99, 6
    %v109 = vrot.slane %v99, 7
    %v110 = vrot.slane %v100, 1
    %v111 = vrot.slane %v100, 2
    %v112 = vrot.slane %v100, 3
    %v113 = vrot.slane %v100, 4
    %v114 = vrot.slane %v100, 5
    %v115 = vrot.slane %v100, 6
    %v116 = vrot.slane %v100, 7
    %v117 = vld [vmem:[%s4] sm:$0xff]
    %v118 = vld [vmem:[#allocation2] sm:$0xff]
    %v119 = vld [vmem:[#allocation2 + $0x8] sm:$0xff]
    %v120 = vld [vmem:[#allocation2 + $0x10] sm:$0xff]
    %v121 = vld [vmem:[#allocation2 + $0x18] sm:$0xff]
    %v122 = vld [vmem:[#allocation2 + $0x20] sm:$0xff]
    %v123 = vld [vmem:[#allocation2 + $0x28] sm:$0xff]
    %v124 = vld [vmem:[#allocation2 + $0x30] sm:$0xff]
    %v125 = vld [vmem:[#allocation2 + $0x38] sm:$0xff]
    %v126 = vld [vmem:[#allocation2 + $0x40] sm:$0xff]
    %v127 = vld [vmem:[#allocation2 + $0x48] sm:$0xff]
    %v128 = vld [vmem:[#allocation2 + $0x50] sm:$0xff]
    %v129 = vld [vmem:[#allocation2 + $0x58] sm:$0xff]
    %v130 = vld [vmem:[#allocation2 + $0x60] sm:$0xff]
    %v131 = vld [vmem:[#allocation2 + $0x68] sm:$0xff]
    %v132 = vld [vmem:[#allocation2 + $0x70] sm:$0xff]
    %v133 = vld [vmem:[#allocation2 + $0x78] sm:$0xff]
    %v134 = vadd.f32 %v117, %v118
    %v135 = vadd.f32 %v117, %v119
    %v136 = vadd.f32 %v117, %v120
    %v137 = vadd.f32 %v117, %v121
    %v138 = vadd.f32 %v117, %v122
    %v139 = vadd.f32 %v117, %v123
    %v140 = vadd.f32 %v117, %v124
    %v141 = vadd.f32 %v117, %v125
    %v142 = vadd.f32 %v117, %v126
    %v143 = vadd.f32 %v117, %v127
    %v144 = vadd.f32 %v117, %v128
    %v145 = vadd.f32 %v117, %v129
    %v146 = vadd.f32 %v117, %v130
    %v147 = vadd.f32 %v117, %v131
    %v148 = vadd.f32 %v117, %v132
    %v149 = vadd.f32 %v117, %v133
    %v150 = vperm.slane %v99, 0
    %v151 = vperm.slane %v103, 0
    %v152 = vperm.slane %v104, 0
    %v153 = vperm.slane %v105, 0
    %v154 = vperm.slane %v106, 0
    %v155 = vperm.slane %v107, 0
    %v156 = vperm.slane %v108, 0
    %v157 = vperm.slane %v109, 0
    %v158 = vperm.slane %v100, 0
    %v159 = vperm.slane %v110, 0
    %v160 = vperm.slane %v111, 0
    %v161 = vperm.slane %v112, 0
    %v162 = vperm.slane %v113, 0
    %v163 = vperm.slane %v114, 0
    %v164 = vperm.slane %v115, 0
    %v165 = vperm.slane %v116, 0
    %v182 = vsub.f32 %v150, %v134
    %v183 = vsub.f32 %v151, %v135
    %v184 = vsub.f32 %v152, %v136
    %v185 = vsub.f32 %v153, %v137
    %v186 = vsub.f32 %v154, %v138
    %v187 = vsub.f32 %v155, %v139
    %v188 = vsub.f32 %v156, %v140
    %v189 = vsub.f32 %v157, %v141
    %v190 = vsub.f32 %v158, %v142
    %v191 = vsub.f32 %v159, %v143
    %v192 = vsub.f32 %v160, %v144
    %v193 = vsub.f32 %v161, %v145
    %v194 = vsub.f32 %v162, %v146
    %v195 = vsub.f32 %v163, %v147
    %v196 = vsub.f32 %v164, %v148
    %v197 = vsub.f32 %v165, %v149
    %v198 = vmul.f32 %v182, %v182
    %v199 = vmul.f32 %v183, %v183
    %v200 = vmul.f32 %v184, %v184
    %v201 = vmul.f32 %v185, %v185
    %v202 = vmul.f32 %v186, %v186
    %v203 = vmul.f32 %v187, %v187
    %v204 = vmul.f32 %v188, %v188
    %v205 = vmul.f32 %v189, %v189
    %v206 = vmul.f32 %v190, %v190
    %v207 = vmul.f32 %v191, %v191
    %v208 = vmul.f32 %v192, %v192
    %v209 = vmul.f32 %v193, %v193
    %v210 = vmul.f32 %v194, %v194
    %v211 = vmul.f32 %v195, %v195
    %v212 = vmul.f32 %v196, %v196
    %v213 = vmul.f32 %v197, %v197
    %214 = vadd.xlane.f32.xlu0 %v198
    %v215 = vpop.xlane.xlu0 %214
    %216 = vadd.xlane.f32.xlu0 %v199
    %v217 = vpop.xlane.xlu0 %216
    %218 = vadd.xlane.f32.xlu0 %v200
    %v219 = vpop.xlane.xlu0 %218
    %220 = vadd.xlane.f32.xlu0 %v201
    %v221 = vpop.xlane.xlu0 %220
    %222 = vadd.xlane.f32.xlu0 %v202
    %v223 = vpop.xlane.xlu0 %222
    %224 = vadd.xlane.f32.xlu0 %v203
    %v225 = vpop.xlane.xlu0 %224
    %226 = vadd.xlane.f32.xlu0 %v204
    %v227 = vpop.xlane.xlu0 %226
    %228 = vadd.xlane.f32.xlu0 %v205
    %v229 = vpop.xlane.xlu0 %228
    %230 = vadd.xlane.f32.xlu0 %v206
    %v231 = vpop.xlane.xlu0 %230
    %232 = vadd.xlane.f32.xlu0 %v207
    %v233 = vpop.xlane.xlu0 %232
    %234 = vadd.xlane.f32.xlu0 %v208
    %v235 = vpop.xlane.xlu0 %234
    %236 = vadd.xlane.f32.xlu0 %v209
    %v237 = vpop.xlane.xlu0 %236
    %238 = vadd.xlane.f32.xlu0 %v210
    %v239 = vpop.xlane.xlu0 %238
    %240 = vadd.xlane.f32.xlu0 %v211
    %v241 = vpop.xlane.xlu0 %240
    %242 = vadd.xlane.f32.xlu0 %v212
    %v243 = vpop.xlane.xlu0 %242
    %244 = vadd.xlane.f32.xlu0 %v213
    %v245 = vpop.xlane.xlu0 %244
    %v246 = vrcp.pop 128.0
    %v247 = vmul.f32 128.0, %v246
    %v248 = vsub.f32 1.0, %v247
    %v249 = vmul.f32 %v246, %v248
    %v250 = vadd.f32 %v246, %v249
    %vm251 = vweird.f32 %v246
    %v252 = vsel %vm251, %v246, %v250
    %v253 = vmul.f32 %v215, %v252
    %v254 = vmul.f32 %v217, %v252
    %v255 = vmul.f32 %v219, %v252
    %v256 = vmul.f32 %v221, %v252
    %v257 = vmul.f32 %v223, %v252
    %v258 = vmul.f32 %v225, %v252
    %v259 = vmul.f32 %v227, %v252
    %v260 = vmul.f32 %v229, %v252
    %v261 = vmul.f32 %v231, %v252
    %v262 = vmul.f32 %v233, %v252
    %v263 = vmul.f32 %v235, %v252
    %v264 = vmul.f32 %v237, %v252
    %v265 = vmul.f32 %v239, %v252
    %v266 = vmul.f32 %v241, %v252
    %v267 = vmul.f32 %v243, %v252
    %v268 = vmul.f32 %v245, %v252
    %v285 = vlaneseq
    %v286 = vand.u32 %v285, 127
    %v287 = vperm.slane %v253, %v286
    %v288 = vperm.slane %v254, %v286
    %v289 = vperm.slane %v255, %v286
    %v290 = vperm.slane %v256, %v286
    %v291 = vperm.slane %v257, %v286
    %v292 = vperm.slane %v258, %v286
    %v293 = vperm.slane %v259, %v286
    %v294 = vperm.slane %v260, %v286
    %v295 = vperm.slane %v261, %v286
    %v296 = vperm.slane %v262, %v286
    %v297 = vperm.slane %v263, %v286
    %v298 = vperm.slane %v264, %v286
    %v299 = vperm.slane %v265, %v286
    %v300 = vperm.slane %v266, %v286
    %v301 = vperm.slane %v267, %v286
    %v302 = vperm.slane %v268, %v286
    %vm303 = vcmask 1041409
    %v304 = vsel %vm303, %v288, %v287
    %vm305 = vcmask 1042434
    %v306 = vsel %vm305, %v289, %v304
    %vm307 = vcmask 1043459
    %v308 = vsel %vm307, %v290, %v306
    %vm309 = vcmask 1044484
    %v310 = vsel %vm309, %v291, %v308
    %vm311 = vcmask 1045509
    %v312 = vsel %vm311, %v292, %v310
    %vm313 = vcmask 1046534
    %v314 = vsel %vm313, %v293, %v312
    %vm315 = vcmask 1047559
    %v316 = vsel %vm315, %v294, %v314
    %v317 = vsel %vm303, %v296, %v295
    %v318 = vsel %vm305, %v297, %v317
    %v319 = vsel %vm307, %v298, %v318
    %v320 = vsel %vm309, %v299, %v319
    %v321 = vsel %vm311, %v300, %v320
    %v322 = vsel %vm313, %v301, %v321
    %v323 = vsel %vm315, %v302, %v322
    %v326 = vmul.f32 %v76, %v316
    %v327 = vmul.f32 %v78, %v323
    %v328 = vsel %vm95, %v326, 0.0
    %v329 = vsel %vm96, %v327, 0.0
    %v330 = vsel %vm50, %v97, 0.0
    %v331 = vsel %vm50, %v98, 0.0
    %v332 = vadd.f32 %v330, %v331
    %333 = vadd.xlane.f32.xlu0 %v332
    %v334 = vpop.xlane.xlu0 %333
    %v335 = vrot.slane %v334, 4
    %v336 = vadd.f32 %v334, %v335
    %v337 = vrot.slane %v336, 2
    %v338 = vadd.f32 %v336, %v337
    %v339 = vrot.slane %v338, 1
    %v340 = vadd.f32 %v338, %v339
    %s341 = vtos %v340
    %v342 = vsel %vm50, %v328, 0.0
    %v343 = vsel %vm50, %v329, 0.0
    %v344 = vadd.f32 %v342, %v343
    %345 = vadd.xlane.f32.xlu0 %v344
    %v346 = vpop.xlane.xlu0 %345
    %v347 = vrot.slane %v346, 4
    %v348 = vadd.f32 %v346, %v347
    %v349 = vrot.slane %v348, 2
    %v350 = vadd.f32 %v348, %v349
    %v351 = vrot.slane %v350, 1
    %v352 = vadd.f32 %v350, %v351
    %s353 = vtos %v352
    %vm354 = vcmp.eq.s32.totalorder %v43, 0
    %vm355 = vcmp.eq.s32.totalorder %v43, 1
    %v356 = vstv %s353
    %v357 = vsel %vm355, %v356, 0.0
    %v358 = vstv %s341
    %v359 = vsel %vm354, %v358, %v357
    %360 = vst [vmem:[#allocation5] sm:$0xff] %v359
    // Predicated region
    $region26: #{tpu_custom_call.1} parent=1 // pred_check
      _
    $region27: #{tpu_custom_call.1} parent=1 // pred_check_branch
      %362 = sbr.rel (0) target = $region29
    $region28: #{tpu_custom_call.1} parent=1 // pred_region
      %364 = vsyncadd [#allocation4], 0
      %s366 = sshll.u32 [#allocation5], 4
      %s367 = int_to_ptr.vmem [resolvable:$true] %s366
      %s368 = sshll.u32 %s5, 4
      %s369 = int_to_ptr.hbm [resolvable:$true] %s368
      %371 = dma.vmem_to_hbm [thread:$0]  %s367, 128, %s369, [#allocation4]
    $region29: #{tpu_custom_call.1} parent=1 // pred_fallthru
      _
    // Predicated region
    $region30: #{tpu_custom_call.1} parent=1 // pred_check
      _
    $region31: #{tpu_custom_call.1} parent=1 // pred_check_branch
      %373 = sbr.rel (0) target = $region33
    $region32: #{tpu_custom_call.1} parent=1 // pred_region
      %375 = dma.done [#allocation4], 128
    $region33: #{tpu_custom_call.1} parent=1 // pred_fallthru
      _
    %376 = vsyncpa [#allocation3], 1
    %377 = vsyncpa [#allocation4], 1

</llo_original>
